<compile_context>
chip_gen: v7x
topology: tpu7x:2x2x1
jax: 0.10.0
libtpu: 0.0.40
codegen_flags: <defaults>
</compile_context>

<pallas_src>
import functools

import jax
import jax.numpy as jnp
from jax.experimental import pallas as pl
from jax.experimental.pallas import tpu as pltpu

_LANE = 128  # vreg lane width; also the synthetic frame size / hidden size


def _sum_all(x2):
    """Reduce a 2-D tile to a (1, 1) f32 array (keepdims, Mosaic-friendly)."""
    return jnp.sum(jnp.sum(x2, axis=1, keepdims=True), axis=0, keepdims=True)


# -----------------------------------------------------------------------------
# Kernel 1: per-utterance moments (streamed over time tiles)
# -----------------------------------------------------------------------------
def _moments_kernel(x_ref, mean_ref, rstd_ref, sum_ref, sq_ref, *, inv_n, eps):
    t = pl.program_id(1)

    @pl.when(t == 0)
    def _():
        sum_ref[...] = jnp.zeros_like(sum_ref)
        sq_ref[...] = jnp.zeros_like(sq_ref)

    x = x_ref[0].astype(jnp.float32)              # (TILE_R, 128) sublane-dense
    sum_ref[...] += _sum_all(x)
    sq_ref[...] += _sum_all(x * x)

    @pl.when(t == pl.num_programs(1) - 1)
    def _():
        # TODO(synk): for extremely long utterances switch to Welford / centered
        # two-pass accumulation; E[x^2]-mean^2 in f32 is fine at these lengths.
        s = sum_ref[...]                           # (1, 1)
        q = sq_ref[...]
        m = s * inv_n
        var = jnp.maximum(q * inv_n - m * m, 0.0)
        r = jax.lax.rsqrt(var + eps)
        mean_ref[...] = jnp.broadcast_to(m.reshape(1, 1, 1), mean_ref.shape)
        rstd_ref[...] = jnp.broadcast_to(r.reshape(1, 1, 1), rstd_ref.shape)


def _compute_moments(audio3, *, tile_rows=512, eps=1e-7):
    """audio3: (B, R, 128) f32 view of the waveform. Returns mean, rstd: (B, 1)."""
    B, R, lane = audio3.shape
    tile_rows = min(tile_rows, R)
    assert R % tile_rows == 0, "time tiles must divide the row count"
    n_t = R // tile_rows
    inv_n = 1.0 / float(R * lane)

    mean3, rstd3 = pl.pallas_call(
        functools.partial(_moments_kernel, inv_n=inv_n, eps=eps),
        grid=(B, n_t),
        in_specs=[pl.BlockSpec((1, tile_rows, lane), lambda b, t: (b, t, 0))],
        out_specs=[
            pl.BlockSpec((1, 1, lane), lambda b, t: (b, 0, 0)),
            pl.BlockSpec((1, 1, lane), lambda b, t: (b, 0, 0)),
        ],
        out_shape=[
            jax.ShapeDtypeStruct((B, 1, lane), jnp.float32),
            jax.ShapeDtypeStruct((B, 1, lane), jnp.float32),
        ],
        scratch_shapes=[pltpu.VMEM((1, 1), jnp.float32),
                        pltpu.VMEM((1, 1), jnp.float32)],
        compiler_params=pltpu.CompilerParams(
            dimension_semantics=("parallel", "arbitrary")),
    )(audio3)
    return mean3[:, :, 0], rstd3[:, :, 0]          # (B, 1) each


# -----------------------------------------------------------------------------
# Kernel 2: apply normalization (streamed, fully parallel grid)
# -----------------------------------------------------------------------------
def _apply_norm_kernel(mean_ref, rstd_ref, x_ref, o_ref):
    b = pl.program_id(0)
    m = mean_ref[b, 0]
    r = rstd_ref[b, 0]
    o_ref[...] = ((x_ref[...].astype(jnp.float32) - m) * r).astype(o_ref.dtype)


def wav2vec2_process(audio, *, tile_rows=512):
    B, T = audio.shape
    assert T % _LANE == 0, "audio length must be a multiple of 128"
    R = T // _LANE
    audio3 = audio.reshape(B, R, _LANE)            # free sublane-dense view

    mean, rstd = _compute_moments(audio3, tile_rows=tile_rows)

    tr = min(tile_rows, R)
    assert R % tr == 0
    n_t = R // tr

    # TODO(synk): output could be emitted bf16 to halve writeback bytes if the
    # downstream consumer tolerates it; kept f32 to match the torch processor.
    out3 = pl.pallas_call(
        _apply_norm_kernel,
        grid=(B, n_t),
        in_specs=[
            pl.BlockSpec(memory_space=pltpu.MemorySpace.SMEM),   # mean (B, 1)
            pl.BlockSpec(memory_space=pltpu.MemorySpace.SMEM),   # rstd (B, 1)
            pl.BlockSpec((1, tr, _LANE), lambda b, t: (b, t, 0)),
        ],
        out_specs=pl.BlockSpec((1, tr, _LANE), lambda b, t: (b, t, 0)),
        out_shape=jax.ShapeDtypeStruct((B, R, _LANE), jnp.float32),
        compiler_params=pltpu.CompilerParams(
            dimension_semantics=("parallel", "parallel")),
    )(mean, rstd, audio3)
    return out3.reshape(B, T)


# -----------------------------------------------------------------------------
# Kernel 3: music2vec path — streamed frames, resident bf16 weights,
#           elementwise hidden-state accumulator, per-utterance partial sums
# -----------------------------------------------------------------------------
def _music2vec_kernel(mean_ref, rstd_ref, x_ref, pw_ref, pb_ref, lw_ref, lb_ref,
                      part_ref, acc_ref, *, num_layers):
    b = pl.program_id(0)
    s = pl.program_id(1)

    @pl.when(s == 0)
    def _():
        acc_ref[...] = jnp.zeros_like(acc_ref)

    # processor normalization of this frame tile (stats precomputed per row)
    m = mean_ref[b, 0]
    r = rstd_ref[b, 0]
    frames = ((x_ref[0].astype(jnp.float32) - m) * r).astype(jnp.bfloat16)  # (TILE_S, F)

    # feature projection — bf16 operands on the MXU, f32 accumulation
    h = jnp.dot(frames, pw_ref[...],
                preferred_element_type=jnp.float32) + pb_ref[...]           # (TILE_S, H)
    hs_sum = h                                      # hidden state 0 (embedding)

    # encoder stack: weights VMEM-resident, statically unrolled
    # TODO(synk): tanh GELU here vs. torch's exact erf GELU (synthetic backbone).
    # TODO(synk): for realistic Data2Vec sizes (H=768, 12 layers) stream layer
    #             weights over an L grid axis with pl.Buffered(2) on v7x.
    for l in range(num_layers):
        y = jnp.dot(h.astype(jnp.bfloat16), lw_ref[l],
                    preferred_element_type=jnp.float32) + lb_ref[l]
        h = jax.nn.gelu(y, approximate=True) + h    # residual
        hs_sum = hs_sum + h                         # elementwise (VALU) accumulate

    acc_ref[...] += _sum_all(hs_sum)                # one XLU reduction per tile

    @pl.when(s == pl.num_programs(1) - 1)
    def _():
        part_ref[...] = jnp.broadcast_to(acc_ref[...].reshape(1, 1, 1),
                                         part_ref.shape)


def music2vec_forward(audio, params, *, tile_frames=512):
    # TODO(synk): the pretrained Data2VecAudio backbone is replaced by a small
    # synthetic projection + residual-GELU encoder; real framing is a strided
    # conv, modeled here as a contiguous reshape (requires T % frame_size == 0).
    B, T = audio.shape
    pw, pb = params["proj_w"], params["proj_b"]     # bf16 (F,H), f32 (1,H)
    lw, lb = params["layer_w"], params["layer_b"]   # bf16 (L,H,H), f32 (L,1,H)
    F, H = pw.shape
    L = lw.shape[0]
    assert T % F == 0, "audio length must be a multiple of frame_size"
    S = T // F
    assert T % _LANE == 0

    audio3 = audio.reshape(B, S, F)                 # free HBM view, no copy
    mean, rstd = _compute_moments(audio.reshape(B, T // _LANE, _LANE))

    ts = min(tile_frames, S)
    assert S % ts == 0
    n_s = S // ts

    part = pl.pallas_call(
        functools.partial(_music2vec_kernel, num_layers=L),
        grid=(B, n_s),
        in_specs=[
            pl.BlockSpec(memory_space=pltpu.MemorySpace.SMEM),          # mean (B,1)
            pl.BlockSpec(memory_space=pltpu.MemorySpace.SMEM),          # rstd (B,1)
            pl.BlockSpec((1, ts, F), lambda b, s: (b, s, 0)),           # streamed frames
            pl.BlockSpec((F, H), lambda b, s: (0, 0)),                  # resident weights
            pl.BlockSpec((1, H), lambda b, s: (0, 0)),
            pl.BlockSpec((L, H, H), lambda b, s: (0, 0, 0)),
            pl.BlockSpec((L, 1, H), lambda b, s: (0, 0, 0)),
        ],
        out_specs=pl.BlockSpec((1, 1, _LANE), lambda b, s: (b, 0, 0)),
        out_shape=jax.ShapeDtypeStruct((B, 1, _LANE), jnp.float32),
        scratch_shapes=[pltpu.VMEM((1, 1), jnp.float32)],
        compiler_params=pltpu.CompilerParams(
            dimension_semantics=("parallel", "arbitrary")),
    )(mean, rstd, audio3, pw, pb, lw, lb)

    denom = float((L + 1) * B * S * H)              # mean over the (L+1) stack
    return jnp.sum(part[:, 0, 0]) * (1.0 / denom)


# -----------------------------------------------------------------------------
# FeatureExtractor forward
# -----------------------------------------------------------------------------
def make_params(key, frame_size=128, hidden=128, num_layers=3):
    """Deterministic synthetic backbone weights (frozen, requires_grad=False).

    Matmul weights are stored bf16 at the call boundary (halves DMA bytes and
    VMEM residency); biases stay f32.
    """
    k = jax.random.split(key, 4)
    return {
        "proj_w": (0.02 * jax.random.normal(k[0], (frame_size, hidden),
                                            jnp.float32)).astype(jnp.bfloat16),
        "proj_b": 0.02 * jax.random.normal(k[1], (1, hidden), jnp.float32),
        "layer_w": (0.02 * jax.random.normal(k[2], (num_layers, hidden, hidden),
                                             jnp.float32)).astype(jnp.bfloat16),
        "layer_b": 0.02 * jax.random.normal(k[3], (num_layers, 1, hidden),
                                            jnp.float32),
    }


def feature_extractor_forward(audio, model, params):
    if model == "wav2vec2":
        return wav2vec2_process(audio)
    elif model == "music2vec":
        return music2vec_forward(audio, params)
    elif model == "clap":
        # TODO(synk): CLAP branch needs an external checkpoint + HTSAT backbone;
        # no clean in-script Pallas equivalent.
        raise NotImplementedError("clap branch not translatable")
    else:
        raise ValueError("unsupported backbone model")


# -----------------------------------------------------------------------------
# Pure-JAX references (mirror kernel math, incl. bf16 matmul operands)
# -----------------------------------------------------------------------------
def wav2vec2_reference(audio):
    m = audio.mean(-1, keepdims=True)
    v = audio.var(-1, keepdims=True)
    return (audio - m) * jax.lax.rsqrt(v + 1e-7)


def music2vec_reference(audio, params):
    pw, pb = params["proj_w"], params["proj_b"]
    lw, lb = params["layer_w"], params["layer_b"]
    F, H = pw.shape
    L = lw.shape[0]
    B, T = audio.shape
    S = T // F
    xn = wav2vec2_reference(audio.astype(jnp.float32))
    frames = xn.reshape(B * S, F).astype(jnp.bfloat16)
    h = jnp.dot(frames, pw, preferred_element_type=jnp.float32) + pb
    hs_sum = h
    for l in range(L):
        y = jnp.dot(h.astype(jnp.bfloat16), lw[l],
                    preferred_element_type=jnp.float32) + lb[l]
        h = jax.nn.gelu(y, approximate=True) + h
        hs_sum = hs_sum + h
    return jnp.sum(hs_sum) / float((L + 1) * B * S * H)


if __name__ == "__main__":
    key = jax.random.PRNGKey(0)
    k_audio, k_params = jax.random.split(key)

    B, T = 2, 131072                               # ~8 s of 16 kHz audio per row
    FRAME, HIDDEN, LAYERS = 128, 128, 3            # lane-dense synthetic backbone
    audio = jax.random.normal(k_audio, (B, T), jnp.float32)
    params = make_params(k_params, frame_size=FRAME, hidden=HIDDEN,
                         num_layers=LAYERS)

    # --- wav2vec2 branch: processor normalization ---------------------------
    emb_w2v = feature_extractor_forward(audio, "wav2vec2", params)
    jax.block_until_ready(emb_w2v)
    ref_w2v = wav2vec2_reference(audio)
    assert emb_w2v.shape == (B, T)
    assert emb_w2v.dtype == jnp.float32
    assert jnp.allclose(emb_w2v, ref_w2v, atol=2e-3, rtol=1e-3)

    # --- music2vec branch: streamed synthetic backbone, stacked-hidden mean -
    emb_m2v = feature_extractor_forward(audio, "music2vec", params)
    jax.block_until_ready(emb_m2v)
    ref_m2v = music2vec_reference(audio, params)
    assert emb_m2v.shape == ()
    assert bool(jnp.isfinite(emb_m2v))
    assert jnp.allclose(emb_m2v, ref_m2v, atol=2e-3, rtol=2e-2)

    print("KERNEL_OK")
</pallas_src>

<mosaic_0001>
module attributes {stable_mosaic.version = 11 : i64} {
  func.func @_moments_kernel(%arg0: i32, %arg1: i32, %arg2: memref<1x512x128xf32, #tpu.memory_space<vmem>>, %arg3: memref<1x1x128xf32, #tpu.memory_space<vmem>>, %arg4: memref<1x1x128xf32, #tpu.memory_space<vmem>>, %arg5: memref<1x1xf32, #tpu.memory_space<vmem>>, %arg6: memref<1x1xf32, #tpu.memory_space<vmem>>) attributes {dimension_semantics = [#tpu.dimension_semantics<parallel>, #tpu.dimension_semantics<arbitrary>], iteration_bounds = array<i64: 2, 2>, scalar_prefetch = 0 : i64, scratch_operands = 2 : i64, tpu.core_type = #tpu.core_type<tc>, window_params = [{transform_indices = @transform_0, window_bounds = array<i64: 1, 512, 128>}, {transform_indices = @transform_1, window_bounds = array<i64: 1, 1, 128>}, {transform_indices = @transform_2, window_bounds = array<i64: 1, 1, 128>}]} {
    %c0_i32 = arith.constant 0 : i32
    %0 = arith.cmpi eq, %arg1, %c0_i32 : i32
    %1 = arith.extui %0 : i1 to i32
    %c0_i32_0 = arith.constant 0 : i32
    %2 = arith.cmpi ne, %1, %c0_i32_0 : i32
    scf.if %2 {
      %cst_15 = arith.constant 0.000000e+00 : f32
      %23 = vector.broadcast %cst_15 : f32 to vector<1x1xf32>
      %c0_16 = arith.constant 0 : index
      %c0_17 = arith.constant 0 : index
      %24 = vector.load %arg5[%c0_16, %c0_17] : memref<1x1xf32, #tpu.memory_space<vmem>>, vector<1x1xf32>
      tpu.vector_store %arg5[%c0_16, %c0_17], %23 {strides = array<i32>} : memref<1x1xf32, #tpu.memory_space<vmem>>, vector<1x1xf32>,
      %cst_18 = arith.constant 0.000000e+00 : f32
      %25 = vector.broadcast %cst_18 : f32 to vector<1x1xf32>
      %c0_19 = arith.constant 0 : index
      %c0_20 = arith.constant 0 : index
      %26 = vector.load %arg6[%c0_19, %c0_20] : memref<1x1xf32, #tpu.memory_space<vmem>>, vector<1x1xf32>
      tpu.vector_store %arg6[%c0_19, %c0_20], %25 {strides = array<i32>} : memref<1x1xf32, #tpu.memory_space<vmem>>, vector<1x1xf32>,
    } else {
    }
    %c0 = arith.constant 0 : index
    %c0_1 = arith.constant 0 : index
    %c0_2 = arith.constant 0 : index
    %3 = vector.load %arg2[%c0, %c0_1, %c0_2] : memref<1x512x128xf32, #tpu.memory_space<vmem>>, vector<1x512x128xf32>
    %4 = vector.shape_cast %3 : vector<1x512x128xf32> to vector<512x128xf32>
    %c0_3 = arith.constant 0 : index
    %c0_4 = arith.constant 0 : index
    %5 = vector.load %arg5[%c0_3, %c0_4] : memref<1x1xf32, #tpu.memory_space<vmem>>, vector<1x1xf32>
    %cst = arith.constant dense<0.000000e+00> : vector<512xf32>
    %6 = vector.multi_reduction <add>, %4, %cst [1] : vector<512x128xf32> to vector<512xf32>
    %7 = vector.shape_cast %6 : vector<512xf32> to vector<512x1xf32>
    %cst_5 = arith.constant dense<0.000000e+00> : vector<1xf32>
    %8 = vector.multi_reduction <add>, %7, %cst_5 [0] : vector<512x1xf32> to vector<1xf32>
    %9 = vector.shape_cast %8 : vector<1xf32> to vector<1x1xf32>
    %10 = arith.addf %5, %9 : vector<1x1xf32>
    %c0_6 = arith.constant 0 : index
    %c0_7 = arith.constant 0 : index
    %11 = vector.load %arg5[%c0_6, %c0_7] : memref<1x1xf32, #tpu.memory_space<vmem>>, vector<1x1xf32>
    tpu.vector_store %arg5[%c0_6, %c0_7], %10 {strides = array<i32>} : memref<1x1xf32, #tpu.memory_space<vmem>>, vector<1x1xf32>,
    %c0_8 = arith.constant 0 : index
    %c0_9 = arith.constant 0 : index
    %12 = vector.load %arg6[%c0_8, %c0_9] : memref<1x1xf32, #tpu.memory_space<vmem>>, vector<1x1xf32>
    %13 = arith.mulf %4, %4 : vector<512x128xf32>
    %cst_10 = arith.constant dense<0.000000e+00> : vector<512xf32>
    %14 = vector.multi_reduction <add>, %13, %cst_10 [1] : vector<512x128xf32> to vector<512xf32>
    %15 = vector.shape_cast %14 : vector<512xf32> to vector<512x1xf32>
    %cst_11 = arith.constant dense<0.000000e+00> : vector<1xf32>
    %16 = vector.multi_reduction <add>, %15, %cst_11 [0] : vector<512x1xf32> to vector<1xf32>
    %17 = vector.shape_cast %16 : vector<1xf32> to vector<1x1xf32>
    %18 = arith.addf %12, %17 : vector<1x1xf32>
    %c0_12 = arith.constant 0 : index
    %c0_13 = arith.constant 0 : index
    %19 = vector.load %arg6[%c0_12, %c0_13] : memref<1x1xf32, #tpu.memory_space<vmem>>, vector<1x1xf32>
    tpu.vector_store %arg6[%c0_12, %c0_13], %18 {strides = array<i32>} : memref<1x1xf32, #tpu.memory_space<vmem>>, vector<1x1xf32>,
    %c1_i32 = arith.constant 1 : i32
    %20 = arith.cmpi eq, %arg1, %c1_i32 : i32
    %21 = arith.extui %20 : i1 to i32
    %c0_i32_14 = arith.constant 0 : i32
    %22 = arith.cmpi ne, %21, %c0_i32_14 : i32
    scf.if %22 {
      %c0_15 = arith.constant 0 : index
      %c0_16 = arith.constant 0 : index
      %23 = vector.load %arg5[%c0_15, %c0_16] : memref<1x1xf32, #tpu.memory_space<vmem>>, vector<1x1xf32>
      %c0_17 = arith.constant 0 : index
      %c0_18 = arith.constant 0 : index
      %24 = vector.load %arg6[%c0_17, %c0_18] : memref<1x1xf32, #tpu.memory_space<vmem>>, vector<1x1xf32>
      %cst_19 = arith.constant 7.62939453E-6 : f32
      %25 = vector.broadcast %cst_19 : f32 to vector<1x1xf32>
      %26 = arith.mulf %23, %25 : vector<1x1xf32>
      %cst_20 = arith.constant 7.62939453E-6 : f32
      %27 = vector.broadcast %cst_20 : f32 to vector<1x1xf32>
      %28 = arith.mulf %24, %27 : vector<1x1xf32>
      %29 = arith.mulf %26, %26 : vector<1x1xf32>
      %30 = arith.subf %28, %29 : vector<1x1xf32>
      %cst_21 = arith.constant 0.000000e+00 : f32
      %31 = vector.broadcast %cst_21 : f32 to vector<1x1xf32>
      %32 = arith.maximumf %30, %31 : vector<1x1xf32>
      %cst_22 = arith.constant 1.000000e-07 : f32
      %33 = vector.broadcast %cst_22 : f32 to vector<1x1xf32>
      %34 = arith.addf %32, %33 : vector<1x1xf32>
      %35 = math.rsqrt %34 : vector<1x1xf32>
      %36 = vector.shape_cast %26 : vector<1x1xf32> to vector<1x1x1xf32>
      %37 = vector.shape_cast %36 : vector<1x1x1xf32> to vector<1x1x1xf32>
      %38 = vector.broadcast %37 : vector<1x1x1xf32> to vector<1x1x128xf32>
      %c0_23 = arith.constant 0 : index
      %c0_24 = arith.constant 0 : index
      %c0_25 = arith.constant 0 : index
      %39 = vector.load %arg3[%c0_23, %c0_24, %c0_25] : memref<1x1x128xf32, #tpu.memory_space<vmem>>, vector<1x1x128xf32>
      tpu.vector_store %arg3[%c0_23, %c0_24, %c0_25], %38 {strides = array<i32>} : memref<1x1x128xf32, #tpu.memory_space<vmem>>, vector<1x1x128xf32>,
      %40 = vector.shape_cast %35 : vector<1x1xf32> to vector<1x1x1xf32>
      %41 = vector.shape_cast %40 : vector<1x1x1xf32> to vector<1x1x1xf32>
      %42 = vector.broadcast %41 : vector<1x1x1xf32> to vector<1x1x128xf32>
      %c0_26 = arith.constant 0 : index
      %c0_27 = arith.constant 0 : index
      %c0_28 = arith.constant 0 : index
      %43 = vector.load %arg4[%c0_26, %c0_27, %c0_28] : memref<1x1x128xf32, #tpu.memory_space<vmem>>, vector<1x1x128xf32>
      tpu.vector_store %arg4[%c0_26, %c0_27, %c0_28], %42 {strides = array<i32>} : memref<1x1x128xf32, #tpu.memory_space<vmem>>, vector<1x1x128xf32>,
    } else {
    }
    return
  }
  func.func @transform_0(%arg0: i32, %arg1: i32) -> (i32, i32, i32) {
    %c0_i32 = arith.constant 0 : i32
    %c0_i32_0 = arith.constant 0 : i32
    return %arg0, %arg1, %c0_i32 : i32, i32, i32
  }
  func.func @transform_1(%arg0: i32, %arg1: i32) -> (i32, i32, i32) {
    %c0_i32 = arith.constant 0 : i32
    %c0_i32_0 = arith.constant 0 : i32
    %c0_i32_1 = arith.constant 0 : i32
    return %arg0, %c0_i32, %c0_i32_0 : i32, i32, i32
  }
  func.func @transform_2(%arg0: i32, %arg1: i32) -> (i32, i32, i32) {
    %c0_i32 = arith.constant 0 : i32
    %c0_i32_0 = arith.constant 0 : i32
    %c0_i32_1 = arith.constant 0 : i32
    return %arg0, %c0_i32, %c0_i32_0 : i32, i32, i32
  }
}

</mosaic_0001>

<llo_original>
// kernel: tpu_custom_call.1
$region0: #{tpu_custom_call.1}
  #allocation0 [shape = 'u32[]', space=smem, size = 0x4, offset = 0x4, fixed_abs, tag = 'smem constant byte address 0x4 - core index']
  #allocation1 [shape = 'u32[144,128]{1,0:T(1,128)}', space=vmem, size = 0x12000, scoped, tag = 'internal scratch']
  #allocation2 [shape = 'f32[1,1]{1,0:T(1,128)}', space=vmem, size = 0x200, scoped, tag = 'scratch operand']
  #allocation3 [shape = 'f32[1,1]{1,0:T(1,128)}', space=vmem, size = 0x200, scoped, tag = 'scratch operand']
  %s0 = inlined_call_operand.hbm [shape: f32[2,1024,128], index: 0, kind: input, shape index: {}]
  %s1 = inlined_call_operand.hbm [shape: f32[2,1,128], index: 1, kind: output, shape index: {0}]
  %s2 = inlined_call_operand.hbm [shape: f32[2,1,128], index: 2, kind: output, shape index: {1}]
  %3 = xla_tuple %s1, %s2
  %s4 = sld [smem:[#allocation0]]
  $region57: #{tpu_custom_call.1} parent=0
    _
  %s6 = ssub.s32 1, %s4
  %s7 = scalar_select 0, %s6, %s4
  $region1: #{tpu_custom_call.1} parent=0
    #allocation4 [shape = 'u8[524288]{0}', space=vmem, size = 0x80000, scoped, tag = 'input window, operand 0']
    #allocation5 [shape = 's32[2]{0}', space=sflag, size = 0x8, scoped, tag = 'scoped memory for tpu_custom_call.1']
    #allocation6 [shape = 's32[2]{0}', space=sflag, size = 0x8, scoped, tag = 'scoped memory for tpu_custom_call.1']
    #allocation7 [shape = 'u8[1024]{0}', space=vmem, size = 0x400, scoped, tag = 'output window, operand 0']
    #allocation8 [shape = 'u8[1024]{0}', space=vmem, size = 0x400, scoped, tag = 'output window, operand 1']
    #allocation9 [shape = 's32[2]{0}', space=sflag, size = 0x8, scoped, tag = 'scoped memory for tpu_custom_call.1']
    %8 = vsyncpa [#allocation5], 0
    %s9 = scalar_lea.sflag [#allocation5], 1
    %10 = vsyncpa %s9, 0
    %11 = vsyncpa [#allocation6], 0
    %s12 = scalar_lea.sflag [#allocation6], 1
    %13 = vsyncpa %s12, 0
    %14 = vsyncpa [#allocation9], 0
    %s15 = scalar_lea.sflag [#allocation9], 1
    %16 = vsyncpa %s15, 0
    loop: start=0, step=1, limit=6
    $region2: #{tpu_custom_call.1} parent=1 // loop_pre_header
      _
    $region3: #{tpu_custom_call.1} parent=1 // loop_header
      %s18 = sphi 0, %s22
      %p19 = scmp.ge.s32.totalorder %s18, 6
      %s25 = sphi 0, %s37
      %s26 = sphi 0, %s33
      %s27 = sphi 0, %s25
      %s28 = sphi 0, %s26
      %s29 = sphi 0, %s27
      %s30 = sphi 0, %s28
      %s42 = sphi 0, %s44
      %s45 = sphi 0, %s42
      %s46 = sphi 0, %s45
      %s62 = sphi 0, %s46
      %s68 = sphi 0, %s70
      %s71 = sphi 0, %s68
      %s72 = sphi 0, %s71
      %s88 = sphi 0, %s72
      %s94 = sphi 0, %s96
      %s97 = sphi 0, %s94
      %s98 = sphi 0, %s97
      %s114 = sphi 0, %s98
    $region4: #{tpu_custom_call.1} parent=1 // loop_header_branch
      %21 = sbr.rel (%p19) target = $region8
    $region5: #{tpu_custom_call.1} parent=1 // loop_body
      %s23 = ssub.s32 %s18, 1
      %s24 = ssub.s32 %s18, 2
      %s31 = sadd.s32 1, %s26
      %p32 = scmp.ge.s32.totalorder %s31, 2
      %s33 = scalar_select %p32, 0, %s31
      %s34 = sadd.s32 1, %s25
      %s35 = scalar_select %p32, %s34, %s25
      %p36 = scmp.ge.s32.totalorder %s35, 2
      %s37 = scalar_select %p36, 0, %s35
      %s38 = ssub.s32 %s25, %s37
      %s39 = ssub.s32 %s26, %s33
      %s40 = sor.u32 %s38, %s39
      %p41 = scmp.eq.s32.totalorder %s40, 0
      %s43 = sadd.s32 %s42, 1
      %s44 = scalar_select %p41, %s42, %s43
      %p47 = pneg %p41
      %p48 = scmp.eq.s32.totalorder %s18, 3
      %p49 = por %p47, %p48
      %p50 = scmp.ne.s32.totalorder %s42, %s45
      %p51 = scmp.eq.s32.totalorder %s18, 0
      %p52 = por %p50, %p51
      %p53 = scmp.ne.s32.totalorder %s42, %s45
      %p54 = scmp.eq.s32.totalorder %s23, 3
      %p55 = por %p53, %p54
      %p56 = scmp.ne.s32.totalorder %s45, %s46
      %p57 = scmp.eq.s32.totalorder %s23, 0
      %p58 = por %p56, %p57
      %p59 = scmp.ne.s32.totalorder %s45, %s46
      %p60 = scmp.eq.s32.totalorder %s24, 3
      %p61 = por %p59, %p60
      %p63 = scmp.ne.s32.totalorder %s46, %s62
      %p64 = scmp.eq.s32.totalorder %s24, 0
      %p65 = por %p63, %p64
      %s66 = ssub.s32 %s25, %s37
      %p67 = scmp.eq.s32.totalorder %s66, 0
      %s69 = sadd.s32 %s68, 1
      %s70 = scalar_select %p67, %s68, %s69
      %p73 = pneg %p67
      %p74 = scmp.eq.s32.totalorder %s18, 3
      %p75 = por %p73, %p74
      %p76 = scmp.ne.s32.totalorder %s68, %s71
      %p77 = scmp.eq.s32.totalorder %s18, 0
      %p78 = por %p76, %p77
      %p79 = scmp.ne.s32.totalorder %s68, %s71
      %p80 = scmp.eq.s32.totalorder %s23, 3
      %p81 = por %p79, %p80
      %p82 = scmp.ne.s32.totalorder %s71, %s72
      %p83 = scmp.eq.s32.totalorder %s23, 0
      %p84 = por %p82, %p83
      %p85 = scmp.ne.s32.totalorder %s71, %s72
      %p86 = scmp.eq.s32.totalorder %s24, 3
      %p87 = por %p85, %p86
      %p89 = scmp.ne.s32.totalorder %s72, %s88
      %p90 = scmp.eq.s32.totalorder %s24, 0
      %p91 = por %p89, %p90
      %s92 = ssub.s32 %s25, %s37
      %p93 = scmp.eq.s32.totalorder %s92, 0
      %s95 = sadd.s32 %s94, 1
      %s96 = scalar_select %p93, %s94, %s95
      %p99 = pneg %p93
      %p100 = scmp.eq.s32.totalorder %s18, 3
      %p101 = por %p99, %p100
      %p102 = scmp.ne.s32.totalorder %s94, %s97
      %p103 = scmp.eq.s32.totalorder %s18, 0
      %p104 = por %p102, %p103
      %p105 = scmp.ne.s32.totalorder %s94, %s97
      %p106 = scmp.eq.s32.totalorder %s23, 3
      %p107 = por %p105, %p106
      %p108 = scmp.ne.s32.totalorder %s97, %s98
      %p109 = scmp.eq.s32.totalorder %s23, 0
      %p110 = por %p108, %p109
      %p111 = scmp.ne.s32.totalorder %s97, %s98
      %p112 = scmp.eq.s32.totalorder %s24, 3
      %p113 = por %p111, %p112
      %p115 = scmp.ne.s32.totalorder %s98, %s114
      %p116 = scmp.eq.s32.totalorder %s24, 0
      %p117 = por %p115, %p116
      %p118 = scmp.le.s32.totalorder 1, %s18
      %p119 = scmp.lt.s32.totalorder %s18, 5
      %p120 = pnand %p118, %p119
      %p121 = pneg %p120
      // Predicated region
      $region9: #{tpu_custom_call.1} parent=5 // pred_check
        _
      $region10: #{tpu_custom_call.1} parent=5 // pred_check_branch
        %123 = sbr.rel (%p120) target = $region12
      $region11: #{tpu_custom_call.1} parent=5 // pred_region
        %s124 = ssub.s32 %s18, 1
      $region12: #{tpu_custom_call.1} parent=5 // pred_fallthru
        _
      %p125 = scmp.lt.s32.totalorder %s18, 4
      // Predicated region
      $region13: #{tpu_custom_call.1} parent=5 // pred_check
        %p126 = pneg %p125
      $region14: #{tpu_custom_call.1} parent=5 // pred_check_branch
        %128 = sbr.rel (%p126) target = $region16
      $region15: #{tpu_custom_call.1} parent=5 // pred_region
        // Predicated region
        $region17: #{tpu_custom_call.1} parent=15 // pred_check
          %p129 = pneg %p52
        $region18: #{tpu_custom_call.1} parent=15 // pred_check_branch
          %131 = sbr.rel (%p129) target = $region20
        $region19: #{tpu_custom_call.1} parent=15 // pred_region
          %s132 = sand.u32 %s42, 1
          %s133 = scalar_lea.sflag [#allocation5], %s132
          %s134 = sand.u32 %s42, 1
          %s135 = smul.addr %s134, 512
          %s136 = scalar_lea.vmem [#allocation4], %s135
          %s137 = smul.u32 64, %s26
          %s139 = ssub.s32 8192, 8192
          %140 = vsyncadd %s133, %s139
          %s141 = smul.addr %s25, 128
          %s142 = sadd.s32 %s137, %s141
          %s143 = smul.addr %s142, 128
          %s144 = scalar_lea.hbm %s0, %s143
          %s145 = sshll.u32 %s136, 4
          %s146 = int_to_ptr.vmem [resolvable:$true] %s145
          %151 = dma.hbm_to_vmem [thread:$0]  %s144, 8192, %s146, %s133, 128, 128, 8
        $region20: #{tpu_custom_call.1} parent=15 // pred_fallthru
          _
      $region16: #{tpu_custom_call.1} parent=5 // pred_fallthru
        _
      %p152 = scmp.le.s32.totalorder 1, %s18
      %p153 = scmp.lt.s32.totalorder %s18, 5
      %p154 = pnand %p152, %p153
      %p155 = pneg %p154
      // Predicated region
      $region21: #{tpu_custom_call.1} parent=5 // pred_check
        _
      $region22: #{tpu_custom_call.1} parent=5 // pred_check_branch
        %157 = sbr.rel (%p154) target = $region24
      $region23: #{tpu_custom_call.1} parent=5 // pred_region
        %s158 = ssub.s32 %s18, 1
        %s159 = sand.u32 %s45, 1
        %s160 = scalar_lea.sflag [#allocation5], %s159
        %s161 = sand.u32 %s45, 1
        %s162 = smul.addr %s161, 512
        %s163 = scalar_lea.vmem [#allocation4], %s162
        // Predicated region
        $region25: #{tpu_custom_call.1} parent=23 // pred_check
          %p164 = pneg %p58
        $region26: #{tpu_custom_call.1} parent=23 // pred_check_branch
          %166 = sbr.rel (%p164) target = $region28
        $region27: #{tpu_custom_call.1} parent=23 // pred_region
          %167 = dma.done %s160, 8192
        $region28: #{tpu_custom_call.1} parent=23 // pred_fallthru
          _
        %s168 = sand.u32 %s45, 1
        %s169 = scalar_lea.sflag [#allocation5], %s168
        %s170 = sand.u32 %s45, 1
        %s171 = smul.addr %s170, 512
        %s172 = scalar_lea.vmem [#allocation4], %s171
        %p173 = pneg %p58
        %p174 = pneg %p55
        %p175 = pneg %p84
        %p176 = pneg %p81
        %s177 = sand.u32 %s71, 1
        %s178 = scalar_lea.sflag [#allocation6], %s177
        %s179 = sand.u32 %s71, 1
        %s180 = scalar_lea.vmem [#allocation7], %s179
        %p181 = pneg %p110
        %p182 = pneg %p107
        %s183 = sand.u32 %s97, 1
        %s184 = scalar_lea.sflag [#allocation9], %s183
        %s185 = sand.u32 %s97, 1
        %s186 = scalar_lea.vmem [#allocation8], %s185
        %s187 = smul.u32 64, %s28
        %p188 = scmp.eq.s32.totalorder %s28, 0
        // Predicated region
        $region29: #{tpu_custom_call.1} parent=23 // pred_check
          %p189 = pneg %p188
        $region30: #{tpu_custom_call.1} parent=23 // pred_check_branch
          %191 = sbr.rel (%p189) target = $region32
        $region31: #{tpu_custom_call.1} parent=23 // pred_region
          %vm192 = vcmask 0
          %193 = vst.msk [vmem:[#allocation2] sm:$0x1] %vm192, 0.0
          %194 = vst.msk [vmem:[#allocation3] sm:$0x1] %vm192, 0.0
        $region32: #{tpu_custom_call.1} parent=23 // pred_fallthru
          _
        %v195 = vld [vmem:[%s163] sm:$0xff]
        %v196 = vld [vmem:[%s163 + $0x8] sm:$0xff]
        %v197 = vld [vmem:[%s163 + $0x10] sm:$0xff]
        %v198 = vld [vmem:[%s163 + $0x18] sm:$0xff]
        %v199 = vld [vmem:[%s163 + $0x20] sm:$0xff]
        %v200 = vld [vmem:[%s163 + $0x28] sm:$0xff]
        %v201 = vld [vmem:[%s163 + $0x30] sm:$0xff]
        %v202 = vld [vmem:[%s163 + $0x38] sm:$0xff]
        %v203 = vld [vmem:[%s163 + $0x40] sm:$0xff]
        %v204 = vld [vmem:[%s163 + $0x48] sm:$0xff]
        %v205 = vld [vmem:[%s163 + $0x50] sm:$0xff]
        %v206 = vld [vmem:[%s163 + $0x58] sm:$0xff]
        %v207 = vld [vmem:[%s163 + $0x60] sm:$0xff]
        %v208 = vld [vmem:[%s163 + $0x68] sm:$0xff]
        %v209 = vld [vmem:[%s163 + $0x70] sm:$0xff]
        %v210 = vld [vmem:[%s163 + $0x78] sm:$0xff]
        %v211 = vld [vmem:[%s163 + $0x80] sm:$0xff]
        %v212 = vld [vmem:[%s163 + $0x88] sm:$0xff]
        %v213 = vld [vmem:[%s163 + $0x90] sm:$0xff]
        %v214 = vld [vmem:[%s163 + $0x98] sm:$0xff]
        %v215 = vld [vmem:[%s163 + $0xa0] sm:$0xff]
        %v216 = vld [vmem:[%s163 + $0xa8] sm:$0xff]
        %v217 = vld [vmem:[%s163 + $0xb0] sm:$0xff]
        %v218 = vld [vmem:[%s163 + $0xb8] sm:$0xff]
        %v219 = vld [vmem:[%s163 + $0xc0] sm:$0xff]
        %v220 = vld [vmem:[%s163 + $0xc8] sm:$0xff]
        %v221 = vld [vmem:[%s163 + $0xd0] sm:$0xff]
        %v222 = vld [vmem:[%s163 + $0xd8] sm:$0xff]
        %v223 = vld [vmem:[%s163 + $0xe0] sm:$0xff]
        %v224 = vld [vmem:[%s163 + $0xe8] sm:$0xff]
        %v225 = vld [vmem:[%s163 + $0xf0] sm:$0xff]
        %v226 = vld [vmem:[%s163 + $0xf8] sm:$0xff]
        %v227 = vld [vmem:[%s163 + $0x100] sm:$0xff]
        %v228 = vld [vmem:[%s163 + $0x108] sm:$0xff]
        %v229 = vld [vmem:[%s163 + $0x110] sm:$0xff]
        %v230 = vld [vmem:[%s163 + $0x118] sm:$0xff]
        %v231 = vld [vmem:[%s163 + $0x120] sm:$0xff]
        %v232 = vld [vmem:[%s163 + $0x128] sm:$0xff]
        %v233 = vld [vmem:[%s163 + $0x130] sm:$0xff]
        %v234 = vld [vmem:[%s163 + $0x138] sm:$0xff]
        %v235 = vld [vmem:[%s163 + $0x140] sm:$0xff]
        %v236 = vld [vmem:[%s163 + $0x148] sm:$0xff]
        %v237 = vld [vmem:[%s163 + $0x150] sm:$0xff]
        %v238 = vld [vmem:[%s163 + $0x158] sm:$0xff]
        %v239 = vld [vmem:[%s163 + $0x160] sm:$0xff]
        %v240 = vld [vmem:[%s163 + $0x168] sm:$0xff]
        %v241 = vld [vmem:[%s163 + $0x170] sm:$0xff]
        %v242 = vld [vmem:[%s163 + $0x178] sm:$0xff]
        %v243 = vld [vmem:[%s163 + $0x180] sm:$0xff]
        %v244 = vld [vmem:[%s163 + $0x188] sm:$0xff]
        %v245 = vld [vmem:[%s163 + $0x190] sm:$0xff]
        %v246 = vld [vmem:[%s163 + $0x198] sm:$0xff]
        %v247 = vld [vmem:[%s163 + $0x1a0] sm:$0xff]
        %v248 = vld [vmem:[%s163 + $0x1a8] sm:$0xff]
        %v249 = vld [vmem:[%s163 + $0x1b0] sm:$0xff]
        %v250 = vld [vmem:[%s163 + $0x1b8] sm:$0xff]
        %v251 = vld [vmem:[%s163 + $0x1c0] sm:$0xff]
        %v252 = vld [vmem:[%s163 + $0x1c8] sm:$0xff]
        %v253 = vld [vmem:[%s163 + $0x1d0] sm:$0xff]
        %v254 = vld [vmem:[%s163 + $0x1d8] sm:$0xff]
        %v255 = vld [vmem:[%s163 + $0x1e0] sm:$0xff]
        %v256 = vld [vmem:[%s163 + $0x1e8] sm:$0xff]
        %v257 = vld [vmem:[%s163 + $0x1f0] sm:$0xff]
        %v258 = vld [vmem:[%s163 + $0x1f8] sm:$0xff]
        %v259 = vld [vmem:[#allocation2] sm:$0x1]
        %260 = vadd.xlane.f32.xlu0 %v195
        %v261 = vpop.xlane.xlu0 %260
        %262 = vadd.xlane.f32.xlu0 %v196
        %v263 = vpop.xlane.xlu0 %262
        %264 = vadd.xlane.f32.xlu0 %v197
        %v265 = vpop.xlane.xlu0 %264
        %266 = vadd.xlane.f32.xlu0 %v198
        %v267 = vpop.xlane.xlu0 %266
        %268 = vadd.xlane.f32.xlu0 %v199
        %v269 = vpop.xlane.xlu0 %268
        %270 = vadd.xlane.f32.xlu0 %v200
        %v271 = vpop.xlane.xlu0 %270
        %272 = vadd.xlane.f32.xlu0 %v201
        %v273 = vpop.xlane.xlu0 %272
        %274 = vadd.xlane.f32.xlu0 %v202
        %v275 = vpop.xlane.xlu0 %274
        %276 = vadd.xlane.f32.xlu0 %v203
        %v277 = vpop.xlane.xlu0 %276
        %278 = vadd.xlane.f32.xlu0 %v204
        %v279 = vpop.xlane.xlu0 %278
        %280 = vadd.xlane.f32.xlu0 %v205
        %v281 = vpop.xlane.xlu0 %280
        %282 = vadd.xlane.f32.xlu0 %v206
        %v283 = vpop.xlane.xlu0 %282
        %284 = vadd.xlane.f32.xlu0 %v207
        %v285 = vpop.xlane.xlu0 %284
        %286 = vadd.xlane.f32.xlu0 %v208
        %v287 = vpop.xlane.xlu0 %286
        %288 = vadd.xlane.f32.xlu0 %v209
        %v289 = vpop.xlane.xlu0 %288
        %290 = vadd.xlane.f32.xlu0 %v210
        %v291 = vpop.xlane.xlu0 %290
        %292 = vadd.xlane.f32.xlu0 %v211
        %v293 = vpop.xlane.xlu0 %292
        %294 = vadd.xlane.f32.xlu0 %v212
        %v295 = vpop.xlane.xlu0 %294
        %296 = vadd.xlane.f32.xlu0 %v213
        %v297 = vpop.xlane.xlu0 %296
        %298 = vadd.xlane.f32.xlu0 %v214
        %v299 = vpop.xlane.xlu0 %298
        %300 = vadd.xlane.f32.xlu0 %v215
        %v301 = vpop.xlane.xlu0 %300
        %302 = vadd.xlane.f32.xlu0 %v216
        %v303 = vpop.xlane.xlu0 %302
        %304 = vadd.xlane.f32.xlu0 %v217
        %v305 = vpop.xlane.xlu0 %304
        %306 = vadd.xlane.f32.xlu0 %v218
        %v307 = vpop.xlane.xlu0 %306
        %308 = vadd.xlane.f32.xlu0 %v219
        %v309 = vpop.xlane.xlu0 %308
        %310 = vadd.xlane.f32.xlu0 %v220
        %v311 = vpop.xlane.xlu0 %310
        %312 = vadd.xlane.f32.xlu0 %v221
        %v313 = vpop.xlane.xlu0 %312
        %314 = vadd.xlane.f32.xlu0 %v222
        %v315 = vpop.xlane.xlu0 %314
        %316 = vadd.xlane.f32.xlu0 %v223
        %v317 = vpop.xlane.xlu0 %316
        %318 = vadd.xlane.f32.xlu0 %v224
        %v319 = vpop.xlane.xlu0 %318
        %320 = vadd.xlane.f32.xlu0 %v225
        %v321 = vpop.xlane.xlu0 %320
        %322 = vadd.xlane.f32.xlu0 %v226
        %v323 = vpop.xlane.xlu0 %322
        %324 = vadd.xlane.f32.xlu0 %v227
        %v325 = vpop.xlane.xlu0 %324
        %326 = vadd.xlane.f32.xlu0 %v228
        %v327 = vpop.xlane.xlu0 %326
        %328 = vadd.xlane.f32.xlu0 %v229
        %v329 = vpop.xlane.xlu0 %328
        %330 = vadd.xlane.f32.xlu0 %v230
        %v331 = vpop.xlane.xlu0 %330
        %332 = vadd.xlane.f32.xlu0 %v231
        %v333 = vpop.xlane.xlu0 %332
        %334 = vadd.xlane.f32.xlu0 %v232
        %v335 = vpop.xlane.xlu0 %334
        %336 = vadd.xlane.f32.xlu0 %v233
        %v337 = vpop.xlane.xlu0 %336
        %338 = vadd.xlane.f32.xlu0 %v234
        %v339 = vpop.xlane.xlu0 %338
        %340 = vadd.xlane.f32.xlu0 %v235
        %v341 = vpop.xlane.xlu0 %340
        %342 = vadd.xlane.f32.xlu0 %v236
        %v343 = vpop.xlane.xlu0 %342
        %344 = vadd.xlane.f32.xlu0 %v237
        %v345 = vpop.xlane.xlu0 %344
        %346 = vadd.xlane.f32.xlu0 %v238
        %v347 = vpop.xlane.xlu0 %346
        %348 = vadd.xlane.f32.xlu0 %v239
        %v349 = vpop.xlane.xlu0 %348
        %350 = vadd.xlane.f32.xlu0 %v240
        %v351 = vpop.xlane.xlu0 %350
        %352 = vadd.xlane.f32.xlu0 %v241
        %v353 = vpop.xlane.xlu0 %352
        %354 = vadd.xlane.f32.xlu0 %v242
        %v355 = vpop.xlane.xlu0 %354
        %356 = vadd.xlane.f32.xlu0 %v243
        %v357 = vpop.xlane.xlu0 %356
        %358 = vadd.xlane.f32.xlu0 %v244
        %v359 = vpop.xlane.xlu0 %358
        %360 = vadd.xlane.f32.xlu0 %v245
        %v361 = vpop.xlane.xlu0 %360
        %362 = vadd.xlane.f32.xlu0 %v246
        %v363 = vpop.xlane.xlu0 %362
        %364 = vadd.xlane.f32.xlu0 %v247
        %v365 = vpop.xlane.xlu0 %364
        %366 = vadd.xlane.f32.xlu0 %v248
        %v367 = vpop.xlane.xlu0 %366
        %368 = vadd.xlane.f32.xlu0 %v249
        %v369 = vpop.xlane.xlu0 %368
        %370 = vadd.xlane.f32.xlu0 %v250
        %v371 = vpop.xlane.xlu0 %370
        %372 = vadd.xlane.f32.xlu0 %v251
        %v373 = vpop.xlane.xlu0 %372
        %374 = vadd.xlane.f32.xlu0 %v252
        %v375 = vpop.xlane.xlu0 %374
        %376 = vadd.xlane.f32.xlu0 %v253
        %v377 = vpop.xlane.xlu0 %376
        %378 = vadd.xlane.f32.xlu0 %v254
        %v379 = vpop.xlane.xlu0 %378
        %380 = vadd.xlane.f32.xlu0 %v255
        %v381 = vpop.xlane.xlu0 %380
        %382 = vadd.xlane.f32.xlu0 %v256
        %v383 = vpop.xlane.xlu0 %382
        %384 = vadd.xlane.f32.xlu0 %v257
        %v385 = vpop.xlane.xlu0 %384
        %386 = vadd.xlane.f32.xlu0 %v258
        %v387 = vpop.xlane.xlu0 %386
        %v388 = vadd.f32 %v261, %v263
        %v389 = vadd.f32 %v388, %v265
        %v390 = vadd.f32 %v389, %v267
        %v391 = vadd.f32 %v390, %v269
        %v392 = vadd.f32 %v391, %v271
        %v393 = vadd.f32 %v392, %v273
        %v394 = vadd.f32 %v393, %v275
        %v395 = vadd.f32 %v394, %v277
        %v396 = vadd.f32 %v395, %v279
        %v397 = vadd.f32 %v396, %v281
        %v398 = vadd.f32 %v397, %v283
        %v399 = vadd.f32 %v398, %v285
        %v400 = vadd.f32 %v399, %v287
        %v401 = vadd.f32 %v400, %v289
        %v402 = vadd.f32 %v401, %v291
        %v403 = vadd.f32 %v402, %v293
        %v404 = vadd.f32 %v403, %v295
        %v405 = vadd.f32 %v404, %v297
        %v406 = vadd.f32 %v405, %v299
        %v407 = vadd.f32 %v406, %v301
        %v408 = vadd.f32 %v407, %v303
        %v409 = vadd.f32 %v408, %v305
        %v410 = vadd.f32 %v409, %v307
        %v411 = vadd.f32 %v410, %v309
        %v412 = vadd.f32 %v411, %v311
        %v413 = vadd.f32 %v412, %v313
        %v414 = vadd.f32 %v413, %v315
        %v415 = vadd.f32 %v414, %v317
        %v416 = vadd.f32 %v415, %v319
        %v417 = vadd.f32 %v416, %v321
        %v418 = vadd.f32 %v417, %v323
        %v419 = vadd.f32 %v418, %v325
        %v420 = vadd.f32 %v419, %v327
        %v421 = vadd.f32 %v420, %v329
        %v422 = vadd.f32 %v421, %v331
        %v423 = vadd.f32 %v422, %v333
        %v424 = vadd.f32 %v423, %v335
        %v425 = vadd.f32 %v424, %v337
        %v426 = vadd.f32 %v425, %v339
        %v427 = vadd.f32 %v426, %v341
        %v428 = vadd.f32 %v427, %v343
        %v429 = vadd.f32 %v428, %v345
        %v430 = vadd.f32 %v429, %v347
        %v431 = vadd.f32 %v430, %v349
        %v432 = vadd.f32 %v431, %v351
        %v433 = vadd.f32 %v432, %v353
        %v434 = vadd.f32 %v433, %v355
        %v435 = vadd.f32 %v434, %v357
        %v436 = vadd.f32 %v435, %v359
        %v437 = vadd.f32 %v436, %v361
        %v438 = vadd.f32 %v437, %v363
        %v439 = vadd.f32 %v438, %v365
        %v440 = vadd.f32 %v439, %v367
        %v441 = vadd.f32 %v440, %v369
        %v442 = vadd.f32 %v441, %v371
        %v443 = vadd.f32 %v442, %v373
        %v444 = vadd.f32 %v443, %v375
        %v445 = vadd.f32 %v444, %v377
        %v446 = vadd.f32 %v445, %v379
        %v447 = vadd.f32 %v446, %v381
        %v448 = vadd.f32 %v447, %v383
        %v449 = vadd.f32 %v448, %v385
        %v450 = vadd.f32 %v449, %v387
        %v451 = vrot.slane %v450, 4
        %v452 = vadd.f32 %v450, %v451
        %v453 = vrot.slane %v452, 2
        %v454 = vadd.f32 %v452, %v453
        %v455 = vrot.slane %v454, 1
        %v456 = vadd.f32 %v454, %v455
        %v457 = vadd.f32 %v259, %v456
        %vm458 = vcmask 0
        %459 = vst.msk [vmem:[#allocation2] sm:$0x1] %vm458, %v457
        %v460 = vld [vmem:[#allocation3] sm:$0x1]
        %v461 = vmul.f32 %v195, %v195
        %v462 = vmul.f32 %v196, %v196
        %v463 = vmul.f32 %v197, %v197
        %v464 = vmul.f32 %v198, %v198
        %v465 = vmul.f32 %v199, %v199
        %v466 = vmul.f32 %v200, %v200
        %v467 = vmul.f32 %v201, %v201
        %v468 = vmul.f32 %v202, %v202
        %v469 = vmul.f32 %v203, %v203
        %v470 = vmul.f32 %v204, %v204
        %v471 = vmul.f32 %v205, %v205
        %v472 = vmul.f32 %v206, %v206
        %v473 = vmul.f32 %v207, %v207
        %v474 = vmul.f32 %v208, %v208
        %v475 = vmul.f32 %v209, %v209
        %v476 = vmul.f32 %v210, %v210
        %v477 = vmul.f32 %v211, %v211
        %v478 = vmul.f32 %v212, %v212
        %v479 = vmul.f32 %v213, %v213
        %v480 = vmul.f32 %v214, %v214
        %v481 = vmul.f32 %v215, %v215
        %v482 = vmul.f32 %v216, %v216
        %v483 = vmul.f32 %v217, %v217
        %v484 = vmul.f32 %v218, %v218
        %v485 = vmul.f32 %v219, %v219
        %v486 = vmul.f32 %v220, %v220
        %v487 = vmul.f32 %v221, %v221
        %v488 = vmul.f32 %v222, %v222
        %v489 = vmul.f32 %v223, %v223
        %v490 = vmul.f32 %v224, %v224
        %v491 = vmul.f32 %v225, %v225
        %v492 = vmul.f32 %v226, %v226
        %v493 = vmul.f32 %v227, %v227
        %v494 = vmul.f32 %v228, %v228
        %v495 = vmul.f32 %v229, %v229
        %v496 = vmul.f32 %v230, %v230
        %v497 = vmul.f32 %v231, %v231
        %v498 = vmul.f32 %v232, %v232
        %v499 = vmul.f32 %v233, %v233
        %v500 = vmul.f32 %v234, %v234
        %v501 = vmul.f32 %v235, %v235
        %v502 = vmul.f32 %v236, %v236
        %v503 = vmul.f32 %v237, %v237
        %v504 = vmul.f32 %v238, %v238
        %v505 = vmul.f32 %v239, %v239
        %v506 = vmul.f32 %v240, %v240
        %v507 = vmul.f32 %v241, %v241
        %v508 = vmul.f32 %v242, %v242
        %v509 = vmul.f32 %v243, %v243
        %v510 = vmul.f32 %v244, %v244
        %v511 = vmul.f32 %v245, %v245
        %v512 = vmul.f32 %v246, %v246
        %v513 = vmul.f32 %v247, %v247
        %v514 = vmul.f32 %v248, %v248
        %v515 = vmul.f32 %v249, %v249
        %v516 = vmul.f32 %v250, %v250
        %v517 = vmul.f32 %v251, %v251
        %v518 = vmul.f32 %v252, %v252
        %v519 = vmul.f32 %v253, %v253
        %v520 = vmul.f32 %v254, %v254
        %v521 = vmul.f32 %v255, %v255
        %v522 = vmul.f32 %v256, %v256
        %v523 = vmul.f32 %v257, %v257
        %v524 = vmul.f32 %v258, %v258
        %525 = vadd.xlane.f32.xlu0 %v461
        %v526 = vpop.xlane.xlu0 %525
        %527 = vadd.xlane.f32.xlu0 %v462
        %v528 = vpop.xlane.xlu0 %527
        %529 = vadd.xlane.f32.xlu0 %v463
        %v530 = vpop.xlane.xlu0 %529
        %531 = vadd.xlane.f32.xlu0 %v464
        %v532 = vpop.xlane.xlu0 %531
        %533 = vadd.xlane.f32.xlu0 %v465
        %v534 = vpop.xlane.xlu0 %533
        %535 = vadd.xlane.f32.xlu0 %v466
        %v536 = vpop.xlane.xlu0 %535
        %537 = vadd.xlane.f32.xlu0 %v467
        %v538 = vpop.xlane.xlu0 %537
        %539 = vadd.xlane.f32.xlu0 %v468
        %v540 = vpop.xlane.xlu0 %539
        %541 = vadd.xlane.f32.xlu0 %v469
        %v542 = vpop.xlane.xlu0 %541
        %543 = vadd.xlane.f32.xlu0 %v470
        %v544 = vpop.xlane.xlu0 %543
        %545 = vadd.xlane.f32.xlu0 %v471
        %v546 = vpop.xlane.xlu0 %545
        %547 = vadd.xlane.f32.xlu0 %v472
        %v548 = vpop.xlane.xlu0 %547
        %549 = vadd.xlane.f32.xlu0 %v473
        %v550 = vpop.xlane.xlu0 %549
        %551 = vadd.xlane.f32.xlu0 %v474
        %v552 = vpop.xlane.xlu0 %551
        %553 = vadd.xlane.f32.xlu0 %v475
        %v554 = vpop.xlane.xlu0 %553
        %555 = vadd.xlane.f32.xlu0 %v476
        %v556 = vpop.xlane.xlu0 %555
        %557 = vadd.xlane.f32.xlu0 %v477
        %v558 = vpop.xlane.xlu0 %557
        %559 = vadd.xlane.f32.xlu0 %v478
        %v560 = vpop.xlane.xlu0 %559
        %561 = vadd.xlane.f32.xlu0 %v479
        %v562 = vpop.xlane.xlu0 %561
        %563 = vadd.xlane.f32.xlu0 %v480
        %v564 = vpop.xlane.xlu0 %563
        %565 = vadd.xlane.f32.xlu0 %v481
        %v566 = vpop.xlane.xlu0 %565
        %567 = vadd.xlane.f32.xlu0 %v482
        %v568 = vpop.xlane.xlu0 %567
        %569 = vadd.xlane.f32.xlu0 %v483
        %v570 = vpop.xlane.xlu0 %569
        %571 = vadd.xlane.f32.xlu0 %v484
        %v572 = vpop.xlane.xlu0 %571
        %573 = vadd.xlane.f32.xlu0 %v485
        %v574 = vpop.xlane.xlu0 %573
        %575 = vadd.xlane.f32.xlu0 %v486
        %v576 = vpop.xlane.xlu0 %575
        %577 = vadd.xlane.f32.xlu0 %v487
        %v578 = vpop.xlane.xlu0 %577
        %579 = vadd.xlane.f32.xlu0 %v488
        %v580 = vpop.xlane.xlu0 %579
        %581 = vadd.xlane.f32.xlu0 %v489
        %v582 = vpop.xlane.xlu0 %581
        %583 = vadd.xlane.f32.xlu0 %v490
        %v584 = vpop.xlane.xlu0 %583
        %585 = vadd.xlane.f32.xlu0 %v491
        %v586 = vpop.xlane.xlu0 %585
        %587 = vadd.xlane.f32.xlu0 %v492
        %v588 = vpop.xlane.xlu0 %587
        %589 = vadd.xlane.f32.xlu0 %v493
        %v590 = vpop.xlane.xlu0 %589
        %591 = vadd.xlane.f32.xlu0 %v494
        %v592 = vpop.xlane.xlu0 %591
        %593 = vadd.xlane.f32.xlu0 %v495
        %v594 = vpop.xlane.xlu0 %593
        %595 = vadd.xlane.f32.xlu0 %v496
        %v596 = vpop.xlane.xlu0 %595
        %597 = vadd.xlane.f32.xlu0 %v497
        %v598 = vpop.xlane.xlu0 %597
        %599 = vadd.xlane.f32.xlu0 %v498
        %v600 = vpop.xlane.xlu0 %599
        %601 = vadd.xlane.f32.xlu0 %v499
        %v602 = vpop.xlane.xlu0 %601
        %603 = vadd.xlane.f32.xlu0 %v500
        %v604 = vpop.xlane.xlu0 %603
        %605 = vadd.xlane.f32.xlu0 %v501
        %v606 = vpop.xlane.xlu0 %605
        %607 = vadd.xlane.f32.xlu0 %v502
        %v608 = vpop.xlane.xlu0 %607
        %609 = vadd.xlane.f32.xlu0 %v503
        %v610 = vpop.xlane.xlu0 %609
        %611 = vadd.xlane.f32.xlu0 %v504
        %v612 = vpop.xlane.xlu0 %611
        %613 = vadd.xlane.f32.xlu0 %v505
        %v614 = vpop.xlane.xlu0 %613
        %615 = vadd.xlane.f32.xlu0 %v506
        %v616 = vpop.xlane.xlu0 %615
        %617 = vadd.xlane.f32.xlu0 %v507
        %v618 = vpop.xlane.xlu0 %617
        %619 = vadd.xlane.f32.xlu0 %v508
        %v620 = vpop.xlane.xlu0 %619
        %621 = vadd.xlane.f32.xlu0 %v509
        %v622 = vpop.xlane.xlu0 %621
        %623 = vadd.xlane.f32.xlu0 %v510
        %v624 = vpop.xlane.xlu0 %623
        %625 = vadd.xlane.f32.xlu0 %v511
        %v626 = vpop.xlane.xlu0 %625
        %627 = vadd.xlane.f32.xlu0 %v512
        %v628 = vpop.xlane.xlu0 %627
        %629 = vadd.xlane.f32.xlu0 %v513
        %v630 = vpop.xlane.xlu0 %629
        %631 = vadd.xlane.f32.xlu0 %v514
        %v632 = vpop.xlane.xlu0 %631
        %633 = vadd.xlane.f32.xlu0 %v515
        %v634 = vpop.xlane.xlu0 %633
        %635 = vadd.xlane.f32.xlu0 %v516
        %v636 = vpop.xlane.xlu0 %635
        %637 = vadd.xlane.f32.xlu0 %v517
        %v638 = vpop.xlane.xlu0 %637
        %639 = vadd.xlane.f32.xlu0 %v518
        %v640 = vpop.xlane.xlu0 %639
        %641 = vadd.xlane.f32.xlu0 %v519
        %v642 = vpop.xlane.xlu0 %641
        %643 = vadd.xlane.f32.xlu0 %v520
        %v644 = vpop.xlane.xlu0 %643
        %645 = vadd.xlane.f32.xlu0 %v521
        %v646 = vpop.xlane.xlu0 %645
        %647 = vadd.xlane.f32.xlu0 %v522
        %v648 = vpop.xlane.xlu0 %647
        %649 = vadd.xlane.f32.xlu0 %v523
        %v650 = vpop.xlane.xlu0 %649
        %651 = vadd.xlane.f32.xlu0 %v524
        %v652 = vpop.xlane.xlu0 %651
        %v653 = vadd.f32 %v526, %v528
        %v654 = vadd.f32 %v653, %v530
        %v655 = vadd.f32 %v654, %v532
        %v656 = vadd.f32 %v655, %v534
        %v657 = vadd.f32 %v656, %v536
        %v658 = vadd.f32 %v657, %v538
        %v659 = vadd.f32 %v658, %v540
        %v660 = vadd.f32 %v659, %v542
        %v661 = vadd.f32 %v660, %v544
        %v662 = vadd.f32 %v661, %v546
        %v663 = vadd.f32 %v662, %v548
        %v664 = vadd.f32 %v663, %v550
        %v665 = vadd.f32 %v664, %v552
        %v666 = vadd.f32 %v665, %v554
        %v667 = vadd.f32 %v666, %v556
        %v668 = vadd.f32 %v667, %v558
        %v669 = vadd.f32 %v668, %v560
        %v670 = vadd.f32 %v669, %v562
        %v671 = vadd.f32 %v670, %v564
        %v672 = vadd.f32 %v671, %v566
        %v673 = vadd.f32 %v672, %v568
        %v674 = vadd.f32 %v673, %v570
        %v675 = vadd.f32 %v674, %v572
        %v676 = vadd.f32 %v675, %v574
        %v677 = vadd.f32 %v676, %v576
        %v678 = vadd.f32 %v677, %v578
        %v679 = vadd.f32 %v678, %v580
        %v680 = vadd.f32 %v679, %v582
        %v681 = vadd.f32 %v680, %v584
        %v682 = vadd.f32 %v681, %v586
        %v683 = vadd.f32 %v682, %v588
        %v684 = vadd.f32 %v683, %v590
        %v685 = vadd.f32 %v684, %v592
        %v686 = vadd.f32 %v685, %v594
        %v687 = vadd.f32 %v686, %v596
        %v688 = vadd.f32 %v687, %v598
        %v689 = vadd.f32 %v688, %v600
        %v690 = vadd.f32 %v689, %v602
        %v691 = vadd.f32 %v690, %v604
        %v692 = vadd.f32 %v691, %v606
        %v693 = vadd.f32 %v692, %v608
        %v694 = vadd.f32 %v693, %v610
        %v695 = vadd.f32 %v694, %v612
        %v696 = vadd.f32 %v695, %v614
        %v697 = vadd.f32 %v696, %v616
        %v698 = vadd.f32 %v697, %v618
        %v699 = vadd.f32 %v698, %v620
        %v700 = vadd.f32 %v699, %v622
        %v701 = vadd.f32 %v700, %v624
        %v702 = vadd.f32 %v701, %v626
        %v703 = vadd.f32 %v702, %v628
        %v704 = vadd.f32 %v703, %v630
        %v705 = vadd.f32 %v704, %v632
        %v706 = vadd.f32 %v705, %v634
        %v707 = vadd.f32 %v706, %v636
        %v708 = vadd.f32 %v707, %v638
        %v709 = vadd.f32 %v708, %v640
        %v710 = vadd.f32 %v709, %v642
        %v711 = vadd.f32 %v710, %v644
        %v712 = vadd.f32 %v711, %v646
        %v713 = vadd.f32 %v712, %v648
        %v714 = vadd.f32 %v713, %v650
        %v715 = vadd.f32 %v714, %v652
        %v716 = vrot.slane %v715, 4
        %v717 = vadd.f32 %v715, %v716
        %v718 = vrot.slane %v717, 2
        %v719 = vadd.f32 %v717, %v718
        %v720 = vrot.slane %v719, 1
        %v721 = vadd.f32 %v719, %v720
        %v722 = vadd.f32 %v460, %v721
        %723 = vst.msk [vmem:[#allocation3] sm:$0x1] %vm458, %v722
        %p724 = scmp.eq.s32.totalorder %s28, 1
        // Predicated region
        $region33: #{tpu_custom_call.1} parent=23 // pred_check
          %p725 = pneg %p724
        $region34: #{tpu_custom_call.1} parent=23 // pred_check_branch
          %727 = sbr.rel (%p725) target = $region36
        $region35: #{tpu_custom_call.1} parent=23 // pred_region
          %v728 = vld [vmem:[#allocation2] sm:$0x1]
          %v729 = vld [vmem:[#allocation3] sm:$0x1]
          %v730 = vmul.f32 %v728, 7.6293945e-06
          %v731 = vmul.f32 %v729, 7.6293945e-06
          %v732 = vmul.f32 %v730, %v730
          %v733 = vsub.f32 %v731, %v732
          %v734 = vmax.f32 %v733, 0.0
          %v735 = vadd.f32 %v734, 1e-07
          %v736 = vrsqrt.pop %v735
          %738 = vset.pattern.permute.xlu0 0
          %739 = vperm.xlu0 %738, %v730
          %v740 = vpop.permute.xlu0 %739
          %v742 = vlaneseq
          %v743 = vshrl.u32 %v742, 7
          %v744 = vsub.s32 0, %v743
          %v745 = vrot.slane %v740, %v744
          %746 = vst [vmem:[%s180] sm:$0x1] %v745
          %748 = vset.pattern.permute.xlu0 0
          %749 = vperm.xlu0 %748, %v736
          %v750 = vpop.permute.xlu0 %749
          %v752 = vlaneseq
          %v753 = vshrl.u32 %v752, 7
          %v754 = vsub.s32 0, %v753
          %v755 = vrot.slane %v750, %v754
          %756 = vst [vmem:[%s186] sm:$0x1] %v755
        $region36: #{tpu_custom_call.1} parent=23 // pred_fallthru
          _
        %s757 = sand.u32 %s71, 1
        %s758 = scalar_lea.sflag [#allocation6], %s757
        %s759 = sand.u32 %s71, 1
        %s760 = scalar_lea.vmem [#allocation7], %s759
        %s761 = sand.u32 %s97, 1
        %s762 = scalar_lea.sflag [#allocation9], %s761
        %s763 = sand.u32 %s97, 1
        %s764 = scalar_lea.vmem [#allocation8], %s763
        // Predicated region
        $region37: #{tpu_custom_call.1} parent=23 // pred_check
          %p765 = pneg %p81
        $region38: #{tpu_custom_call.1} parent=23 // pred_check_branch
          %767 = sbr.rel (%p765) target = $region40
        $region39: #{tpu_custom_call.1} parent=23 // pred_region
          %s769 = ssub.s32 16, 16
          %770 = vsyncadd %s758, %s769
          %s771 = smul.addr %s27, 16
          %s772 = scalar_lea.hbm %s1, %s771
          %s774 = sshll.u32 %s760, 4
          %s775 = int_to_ptr.vmem [resolvable:$true] %s774
          %777 = dma.vmem_to_hbm [thread:$0]  %s775, 16, %s772, %s758
        $region40: #{tpu_custom_call.1} parent=23 // pred_fallthru
          _
        // Predicated region
        $region41: #{tpu_custom_call.1} parent=23 // pred_check
          %p778 = pneg %p107
        $region42: #{tpu_custom_call.1} parent=23 // pred_check_branch
          %780 = sbr.rel (%p778) target = $region44
        $region43: #{tpu_custom_call.1} parent=23 // pred_region
          %s782 = ssub.s32 16, 16
          %783 = vsyncadd %s762, %s782
          %s784 = smul.addr %s27, 16
          %s785 = scalar_lea.hbm %s2, %s784
          %s787 = sshll.u32 %s764, 4
          %s788 = int_to_ptr.vmem [resolvable:$true] %s787
          %790 = dma.vmem_to_hbm [thread:$0]  %s788, 16, %s785, %s762
        $region44: #{tpu_custom_call.1} parent=23 // pred_fallthru
          _
      $region24: #{tpu_custom_call.1} parent=5 // pred_fallthru
        _
      %p791 = scmp.le.s32.totalorder 2, %s18
      // Predicated region
      $region45: #{tpu_custom_call.1} parent=5 // pred_check
        %p792 = pneg %p791
      $region46: #{tpu_custom_call.1} parent=5 // pred_check_branch
        %794 = sbr.rel (%p792) target = $region48
      $region47: #{tpu_custom_call.1} parent=5 // pred_region
        %s795 = ssub.s32 %s18, 2
        // Predicated region
        $region49: #{tpu_custom_call.1} parent=47 // pred_check
          %p796 = pneg %p87
        $region50: #{tpu_custom_call.1} parent=47 // pred_check_branch
          %798 = sbr.rel (%p796) target = $region52
        $region51: #{tpu_custom_call.1} parent=47 // pred_region
          %s799 = sand.u32 %s72, 1
          %s800 = scalar_lea.sflag [#allocation6], %s799
          %s801 = sand.u32 %s72, 1
          %s802 = scalar_lea.vmem [#allocation7], %s801
          %803 = dma.done %s800, 16
        $region52: #{tpu_custom_call.1} parent=47 // pred_fallthru
          _
        // Predicated region
        $region53: #{tpu_custom_call.1} parent=47 // pred_check
          %p804 = pneg %p113
        $region54: #{tpu_custom_call.1} parent=47 // pred_check_branch
          %806 = sbr.rel (%p804) target = $region56
        $region55: #{tpu_custom_call.1} parent=47 // pred_region
          %s807 = sand.u32 %s98, 1
          %s808 = scalar_lea.sflag [#allocation9], %s807
          %s809 = sand.u32 %s98, 1
          %s810 = scalar_lea.vmem [#allocation8], %s809
          %811 = dma.done %s808, 16
        $region56: #{tpu_custom_call.1} parent=47 // pred_fallthru
          _
      $region48: #{tpu_custom_call.1} parent=5 // pred_fallthru
        _
    $region6: #{tpu_custom_call.1} parent=1 // loop_footer
      %s22 = sadd.s32 1, %s18
    $region7: #{tpu_custom_call.1} parent=1 // loop_footer_branch
      %17 = sbr.rel target = $region3
    $region8: #{tpu_custom_call.1} parent=1 // loop_exit
      _
    %812 = vsyncpa [#allocation5], 1
    %s813 = scalar_lea.sflag [#allocation5], 1
    %814 = vsyncpa %s813, 1
    %815 = vsyncpa [#allocation6], 1
    %s816 = scalar_lea.sflag [#allocation6], 1
    %817 = vsyncpa %s816, 1
    %818 = vsyncpa [#allocation9], 1
    %s819 = scalar_lea.sflag [#allocation9], 1
    %820 = vsyncpa %s819, 1

</llo_original>
